<compile_context>
chip_gen: v7x
topology: tpu7x:2x2x1
jax: 0.10.0
libtpu: 0.0.40
codegen_flags: <defaults>
</compile_context>

<pallas_src>
import jax
import jax.numpy as jnp
from jax.experimental import pallas as pl
from jax.experimental.pallas import tpu as pltpu

# --- FCNet default architecture (PyTorch __init__ defaults) ---
INFEATS = 10
OUTFEATS = 10
HIDDEN = [15, 10, 15]                       # layers=[15, 10, 15]
DIMS = [INFEATS] + HIDDEN + [OUTFEATS]      # [10, 15, 10, 15, 10]

DEFAULT_TILE_B = 32768                      # batch rows per grid step (multiple of 128)


def _round_up(x, m):
    return ((x + m - 1) // m) * m


def fcnet_kernel(x_ref,
                 w1_ref, b1_ref,
                 w2_ref, b2_ref,
                 w3_ref, b3_ref,
                 w4_ref, b4_ref,
                 o_ref):
    """Fused MLP forward in feature-major (lane-dense) layout.

    x_ref:  (INFEATS, TILE_B)            activations, batch on the 128-lane axis
    wN_ref: (out_features, in_features)  PyTorch nn.Linear weight layout
                                         (compute_dtype, e.g. bf16)
    bN_ref: (out_features, 1)            float32 (bias-add stays f32)
    o_ref:  (OUTFEATS, TILE_B)
    """
    cdt = w1_ref.dtype  # MXU operand dtype (bf16 fast path or f32)

    h = x_ref[...].astype(cdt)                                  # (10, TILE_B)

    # layer 1: Linear(10 -> 15) + ReLU       (f32 accumulate, f32 bias/ReLU)
    h = jnp.dot(w1_ref[...], h, preferred_element_type=jnp.float32) + b1_ref[...]
    h = jnp.maximum(h, 0.0).astype(cdt)

    # layer 2: Linear(15 -> 10) + ReLU
    h = jnp.dot(w2_ref[...], h, preferred_element_type=jnp.float32) + b2_ref[...]
    h = jnp.maximum(h, 0.0).astype(cdt)

    # layer 3: Linear(10 -> 15) + ReLU
    h = jnp.dot(w3_ref[...], h, preferred_element_type=jnp.float32) + b3_ref[...]
    h = jnp.maximum(h, 0.0).astype(cdt)

    # output layer: Linear(15 -> 10), no activation (lastivation=None)
    y = jnp.dot(w4_ref[...], h, preferred_element_type=jnp.float32) + b4_ref[...]
    o_ref[...] = y.astype(o_ref.dtype)


def _choose_tile(batch, requested):
    """Pick a batch tile: multiple of 128, >=2 tiles when possible, balanced."""
    b128 = _round_up(max(batch, 1), 128)
    tile = min(_round_up(requested, 128), b128)
    # v7x megacore: make sure there are >= 2 grid steps so the "parallel"
    # batch axis can be sharded across both TensorCores (no-op on v5e/v6e).
    if tile >= b128 and b128 >= 256:
        tile = _round_up(b128 // 2, 128)
    # Balance the tiles so the tail padding / partial block is < 1 tile
    # (e.g. batch=100k, requested=32768 -> 4 tiles of 25088, not 4x32768).
    n_tiles = pl.cdiv(b128, tile)
    tile = _round_up(pl.cdiv(b128, n_tiles), 128)
    return tile


def _flatten_params(params, compute_dtype):
    """[(W, b)] -> [W1, b1, W2, b2, ...]; W in compute_dtype, b kept f32."""
    flat = []
    for w, b in params:
        flat.append(w.astype(compute_dtype))
        flat.append(b.reshape(b.shape[0], 1).astype(jnp.float32))
    return flat


def _fcnet_pallas(xT, flat_params, *, tile_b, out_dtype):
    """Core pallas_call: xT is (INFEATS, B) feature-major; returns (OUTFEATS, B)."""
    _, b = xT.shape
    n_tiles = pl.cdiv(b, tile_b)

    # x / y tiles stream over the batch grid; params are resident (constant
    # index_map -> copied into VMEM once, not per tile).
    x_spec = pl.BlockSpec((INFEATS, tile_b), lambda i: (0, i))
    out_spec = pl.BlockSpec((OUTFEATS, tile_b), lambda i: (0, i))
    param_specs = [pl.BlockSpec(p.shape, lambda i: (0, 0)) for p in flat_params]

    flops = 2 * b * sum(DIMS[i] * DIMS[i + 1] for i in range(len(DIMS) - 1))
    param_bytes = sum(int(p.size) * p.dtype.itemsize for p in flat_params)
    bytes_accessed = (b * INFEATS * xT.dtype.itemsize
                      + b * OUTFEATS * jnp.dtype(out_dtype).itemsize
                      + param_bytes)

    return pl.pallas_call(
        fcnet_kernel,
        out_shape=jax.ShapeDtypeStruct((OUTFEATS, b), out_dtype),
        grid=(n_tiles,),
        in_specs=[x_spec] + param_specs,
        out_specs=out_spec,
        compiler_params=pltpu.CompilerParams(
            dimension_semantics=("parallel",)),
        cost_estimate=pl.CostEstimate(
            flops=flops, transcendentals=0, bytes_accessed=bytes_accessed),
    )(xT, *flat_params)


def fcnet_forward_feature_major(xT, params, *, tile_b=DEFAULT_TILE_B,
                                compute_dtype=jnp.bfloat16, out_dtype=None):
    """Preferred zero-copy entry point.

    xT:     (INFEATS, batch) feature-major activations (any float dtype; pass
            bf16 to also halve the HBM read when using the bf16 fast path).
    Returns (OUTFEATS, batch) in `out_dtype` (defaults to xT.dtype).
    No wrapper transpose / pad: a ragged final tile is handled by Pallas
    partial-block DMA (garbage columns on read, dropped on write — safe since
    batch columns are independent).
    """
    nfeat, batch = xT.shape
    assert nfeat == INFEATS, f"expected {INFEATS} input features, got {nfeat}"
    out_dtype = xT.dtype if out_dtype is None else out_dtype
    tile = _choose_tile(batch, tile_b)
    flat = _flatten_params(params, compute_dtype)
    return _fcnet_pallas(xT, flat, tile_b=tile, out_dtype=out_dtype)


def fcnet_forward(x, params, *, tile_b=DEFAULT_TILE_B, compute_dtype=jnp.bfloat16):
    """PyTorch-layout compatibility entry point.

    x:      (batch, INFEATS) — nn.Linear layout.
    params: list of (W, b), W (out_features, in_features), b (out_features,).
    Returns (batch, OUTFEATS) in x.dtype.

    The cast + transpose + tail-pad into the kernel's feature-major layout is
    one producer chain (fusable into a single copy); for a truly copy-free
    path keep the surrounding graph feature-major and call
    fcnet_forward_feature_major instead.
    """
    batch = x.shape[0]
    tile = _choose_tile(batch, tile_b)
    padded = _round_up(batch, tile)

    xT = x.astype(compute_dtype).T                     # (INFEATS, batch)
    if padded != batch:
        xT = jnp.pad(xT, ((0, 0), (0, padded - batch)))

    flat = _flatten_params(params, compute_dtype)
    yT = _fcnet_pallas(xT, flat, tile_b=tile, out_dtype=compute_dtype)

    # Back to PyTorch (batch, features) layout, dropping pad columns.
    return yT[:, :batch].T.astype(x.dtype)


def init_params(key):
    """nn.Linear-style init: uniform +/- 1/sqrt(fan_in); W is (out, in)."""
    params = []
    for i in range(len(DIMS) - 1):
        fan_in, fan_out = DIMS[i], DIMS[i + 1]
        key, kw, kb = jax.random.split(key, 3)
        bound = 1.0 / jnp.sqrt(jnp.float32(fan_in))
        w = jax.random.uniform(kw, (fan_out, fan_in), jnp.float32, -bound, bound)
        b = jax.random.uniform(kb, (fan_out,), jnp.float32, -bound, bound)
        params.append((w, b))
    return params


def fcnet_reference(x, params):
    """Pure-JAX reference (PyTorch semantics: x @ W.T + b, ReLU between)."""
    h = x
    for i, (w, b) in enumerate(params):
        h = h @ w.T + b
        if i < len(params) - 1:
            h = jnp.maximum(h, 0.0)
    return h


if __name__ == "__main__":
    key = jax.random.PRNGKey(0)
    key, kx1, kx2 = jax.random.split(key, 3)
    params = init_params(key)

    # 1) tiny batch, PyTorch layout, exact f32 compute path
    x_small = jax.random.normal(kx1, (8, INFEATS), jnp.float32)
    out_small = jax.block_until_ready(
        fcnet_forward(x_small, params, compute_dtype=jnp.float32))
    ref_small = fcnet_reference(x_small, params)
    assert out_small.shape == (8, OUTFEATS), out_small.shape
    assert jnp.allclose(out_small, ref_small, atol=1e-5, rtol=1e-5), \
        "f32 path mismatch vs reference"

    # 2) multi-tile batch, PyTorch layout, default bf16 fast path (f32 accum)
    x_big = jax.random.normal(kx2, (512, INFEATS), jnp.float32)
    out_big = jax.block_until_ready(fcnet_forward(x_big, params))
    ref_big = fcnet_reference(x_big, params)
    assert out_big.shape == (512, OUTFEATS), out_big.shape
    assert jnp.allclose(out_big, ref_big, atol=5e-2, rtol=5e-2), \
        "bf16 path mismatch vs f32 reference"

    # 3) feature-major zero-copy entry point (preferred), f32 compute
    out_fm = jax.block_until_ready(
        fcnet_forward_feature_major(x_big.T, params, compute_dtype=jnp.float32))
    assert out_fm.shape == (OUTFEATS, 512), out_fm.shape
    assert jnp.allclose(out_fm.T, ref_big, atol=1e-5, rtol=1e-5), \
        "feature-major path mismatch vs reference"

    print("KERNEL_OK")
</pallas_src>

<mosaic_0001>
module attributes {stable_mosaic.version = 11 : i64} {
  func.func @fcnet_kernel(%arg0: i32, %arg1: memref<10x128xf32, #tpu.memory_space<vmem>>, %arg2: memref<15x10xf32, #tpu.memory_space<vmem>>, %arg3: memref<15x1xf32, #tpu.memory_space<vmem>>, %arg4: memref<10x15xf32, #tpu.memory_space<vmem>>, %arg5: memref<10x1xf32, #tpu.memory_space<vmem>>, %arg6: memref<15x10xf32, #tpu.memory_space<vmem>>, %arg7: memref<15x1xf32, #tpu.memory_space<vmem>>, %arg8: memref<10x15xf32, #tpu.memory_space<vmem>>, %arg9: memref<10x1xf32, #tpu.memory_space<vmem>>, %arg10: memref<10x128xf32, #tpu.memory_space<vmem>>) attributes {dimension_semantics = [#tpu.dimension_semantics<parallel>], iteration_bounds = array<i64: 1>, scalar_prefetch = 0 : i64, scratch_operands = 0 : i64, tpu.core_type = #tpu.core_type<tc>, window_params = [{transform_indices = @transform_0, window_bounds = array<i64: 10, 128>}, {pipeline_mode = #tpu.pipeline_mode<synchronous>, transform_indices = @transform_1, window_bounds = array<i64: 15, 10>}, {pipeline_mode = #tpu.pipeline_mode<synchronous>, transform_indices = @transform_2, window_bounds = array<i64: 15, 1>}, {pipeline_mode = #tpu.pipeline_mode<synchronous>, transform_indices = @transform_3, window_bounds = array<i64: 10, 15>}, {pipeline_mode = #tpu.pipeline_mode<synchronous>, transform_indices = @transform_4, window_bounds = array<i64: 10, 1>}, {pipeline_mode = #tpu.pipeline_mode<synchronous>, transform_indices = @transform_5, window_bounds = array<i64: 15, 10>}, {pipeline_mode = #tpu.pipeline_mode<synchronous>, transform_indices = @transform_6, window_bounds = array<i64: 15, 1>}, {pipeline_mode = #tpu.pipeline_mode<synchronous>, transform_indices = @transform_7, window_bounds = array<i64: 10, 15>}, {pipeline_mode = #tpu.pipeline_mode<synchronous>, transform_indices = @transform_8, window_bounds = array<i64: 10, 1>}, {transform_indices = @transform_9, window_bounds = array<i64: 10, 128>}]} {
    %c0 = arith.constant 0 : index
    %c0_0 = arith.constant 0 : index
    %0 = vector.load %arg1[%c0, %c0_0] : memref<10x128xf32, #tpu.memory_space<vmem>>, vector<10x128xf32>
    %c0_1 = arith.constant 0 : index
    %c0_2 = arith.constant 0 : index
    %1 = vector.load %arg2[%c0_1, %c0_2] : memref<15x10xf32, #tpu.memory_space<vmem>>, vector<15x10xf32>
    %cst = arith.constant dense<0.000000e+00> : vector<15x128xf32>
    %2 = tpu.matmul %1, %0, %cst {dimension_numbers = #tpu.dot_dimension_numbers<[1], [0], [0], [1], [0, 0, 1, 1], [], []>} : vector<15x10xf32>, vector<10x128xf32>, vector<15x128xf32> -> vector<15x128xf32>
    %c0_3 = arith.constant 0 : index
    %c0_4 = arith.constant 0 : index
    %3 = vector.load %arg3[%c0_3, %c0_4] : memref<15x1xf32, #tpu.memory_space<vmem>>, vector<15x1xf32>
    %4 = vector.broadcast %3 : vector<15x1xf32> to vector<15x128xf32>
    %5 = arith.addf %2, %4 : vector<15x128xf32>
    %cst_5 = arith.constant 0.000000e+00 : f32
    %6 = vector.broadcast %cst_5 : f32 to vector<15x128xf32>
    %7 = arith.maximumf %5, %6 : vector<15x128xf32>
    %c0_6 = arith.constant 0 : index
    %c0_7 = arith.constant 0 : index
    %8 = vector.load %arg4[%c0_6, %c0_7] : memref<10x15xf32, #tpu.memory_space<vmem>>, vector<10x15xf32>
    %cst_8 = arith.constant dense<0.000000e+00> : vector<10x128xf32>
    %9 = tpu.matmul %8, %7, %cst_8 {dimension_numbers = #tpu.dot_dimension_numbers<[1], [0], [0], [1], [0, 0, 1, 1], [], []>} : vector<10x15xf32>, vector<15x128xf32>, vector<10x128xf32> -> vector<10x128xf32>
    %c0_9 = arith.constant 0 : index
    %c0_10 = arith.constant 0 : index
    %10 = vector.load %arg5[%c0_9, %c0_10] : memref<10x1xf32, #tpu.memory_space<vmem>>, vector<10x1xf32>
    %11 = vector.broadcast %10 : vector<10x1xf32> to vector<10x128xf32>
    %12 = arith.addf %9, %11 : vector<10x128xf32>
    %cst_11 = arith.constant 0.000000e+00 : f32
    %13 = vector.broadcast %cst_11 : f32 to vector<10x128xf32>
    %14 = arith.maximumf %12, %13 : vector<10x128xf32>
    %c0_12 = arith.constant 0 : index
    %c0_13 = arith.constant 0 : index
    %15 = vector.load %arg6[%c0_12, %c0_13] : memref<15x10xf32, #tpu.memory_space<vmem>>, vector<15x10xf32>
    %cst_14 = arith.constant dense<0.000000e+00> : vector<15x128xf32>
    %16 = tpu.matmul %15, %14, %cst_14 {dimension_numbers = #tpu.dot_dimension_numbers<[1], [0], [0], [1], [0, 0, 1, 1], [], []>} : vector<15x10xf32>, vector<10x128xf32>, vector<15x128xf32> -> vector<15x128xf32>
    %c0_15 = arith.constant 0 : index
    %c0_16 = arith.constant 0 : index
    %17 = vector.load %arg7[%c0_15, %c0_16] : memref<15x1xf32, #tpu.memory_space<vmem>>, vector<15x1xf32>
    %18 = vector.broadcast %17 : vector<15x1xf32> to vector<15x128xf32>
    %19 = arith.addf %16, %18 : vector<15x128xf32>
    %cst_17 = arith.constant 0.000000e+00 : f32
    %20 = vector.broadcast %cst_17 : f32 to vector<15x128xf32>
    %21 = arith.maximumf %19, %20 : vector<15x128xf32>
    %c0_18 = arith.constant 0 : index
    %c0_19 = arith.constant 0 : index
    %22 = vector.load %arg8[%c0_18, %c0_19] : memref<10x15xf32, #tpu.memory_space<vmem>>, vector<10x15xf32>
    %cst_20 = arith.constant dense<0.000000e+00> : vector<10x128xf32>
    %23 = tpu.matmul %22, %21, %cst_20 {dimension_numbers = #tpu.dot_dimension_numbers<[1], [0], [0], [1], [0, 0, 1, 1], [], []>} : vector<10x15xf32>, vector<15x128xf32>, vector<10x128xf32> -> vector<10x128xf32>
    %c0_21 = arith.constant 0 : index
    %c0_22 = arith.constant 0 : index
    %24 = vector.load %arg9[%c0_21, %c0_22] : memref<10x1xf32, #tpu.memory_space<vmem>>, vector<10x1xf32>
    %25 = vector.broadcast %24 : vector<10x1xf32> to vector<10x128xf32>
    %26 = arith.addf %23, %25 : vector<10x128xf32>
    %c0_23 = arith.constant 0 : index
    %c0_24 = arith.constant 0 : index
    %27 = vector.load %arg10[%c0_23, %c0_24] : memref<10x128xf32, #tpu.memory_space<vmem>>, vector<10x128xf32>
    tpu.vector_store %arg10[%c0_23, %c0_24], %26 {strides = array<i32>} : memref<10x128xf32, #tpu.memory_space<vmem>>, vector<10x128xf32>,
    return
  }
  func.func @transform_0(%arg0: i32) -> (i32, i32) {
    %c0_i32 = arith.constant 0 : i32
    %c0_i32_0 = arith.constant 0 : i32
    return %c0_i32, %arg0 : i32, i32
  }
  func.func @transform_1(%arg0: i32) -> (i32, i32) {
    %c0_i32 = arith.constant 0 : i32
    %c0_i32_0 = arith.constant 0 : i32
    %c0_i32_1 = arith.constant 0 : i32
    return %c0_i32, %c0_i32_0 : i32, i32
  }
  func.func @transform_2(%arg0: i32) -> (i32, i32) {
    %c0_i32 = arith.constant 0 : i32
    %c0_i32_0 = arith.constant 0 : i32
    %c0_i32_1 = arith.constant 0 : i32
    return %c0_i32, %c0_i32_0 : i32, i32
  }
  func.func @transform_3(%arg0: i32) -> (i32, i32) {
    %c0_i32 = arith.constant 0 : i32
    %c0_i32_0 = arith.constant 0 : i32
    %c0_i32_1 = arith.constant 0 : i32
    return %c0_i32, %c0_i32_0 : i32, i32
  }
  func.func @transform_4(%arg0: i32) -> (i32, i32) {
    %c0_i32 = arith.constant 0 : i32
    %c0_i32_0 = arith.constant 0 : i32
    %c0_i32_1 = arith.constant 0 : i32
    return %c0_i32, %c0_i32_0 : i32, i32
  }
  func.func @transform_5(%arg0: i32) -> (i32, i32) {
    %c0_i32 = arith.constant 0 : i32
    %c0_i32_0 = arith.constant 0 : i32
    %c0_i32_1 = arith.constant 0 : i32
    return %c0_i32, %c0_i32_0 : i32, i32
  }
  func.func @transform_6(%arg0: i32) -> (i32, i32) {
    %c0_i32 = arith.constant 0 : i32
    %c0_i32_0 = arith.constant 0 : i32
    %c0_i32_1 = arith.constant 0 : i32
    return %c0_i32, %c0_i32_0 : i32, i32
  }
  func.func @transform_7(%arg0: i32) -> (i32, i32) {
    %c0_i32 = arith.constant 0 : i32
    %c0_i32_0 = arith.constant 0 : i32
    %c0_i32_1 = arith.constant 0 : i32
    return %c0_i32, %c0_i32_0 : i32, i32
  }
  func.func @transform_8(%arg0: i32) -> (i32, i32) {
    %c0_i32 = arith.constant 0 : i32
    %c0_i32_0 = arith.constant 0 : i32
    %c0_i32_1 = arith.constant 0 : i32
    return %c0_i32, %c0_i32_0 : i32, i32
  }
  func.func @transform_9(%arg0: i32) -> (i32, i32) {
    %c0_i32 = arith.constant 0 : i32
    %c0_i32_0 = arith.constant 0 : i32
    return %c0_i32, %arg0 : i32, i32
  }
}

</mosaic_0001>

<llo_original>
// kernel: tpu_custom_call.1
$region0: #{tpu_custom_call.1}
  #allocation0 [shape = 'u32[]', space=smem, size = 0x4, offset = 0x4, fixed_abs, tag = 'smem constant byte address 0x4 - core index']
  #allocation1 [shape = 'u32[144,128]{1,0:T(1,128)}', space=vmem, size = 0x12000, scoped, tag = 'internal scratch']
  %s0 = inlined_call_operand.vmem [shape: f32[10,128], index: 0, kind: input, shape index: {}]
  %s1 = inlined_call_operand.vmem [shape: f32[15,10], index: 1, kind: input, shape index: {}]
  %s2 = inlined_call_operand.vmem [shape: f32[15,1], index: 2, kind: input, shape index: {}]
  %s3 = inlined_call_operand.vmem [shape: f32[10,15], index: 3, kind: input, shape index: {}]
  %s4 = inlined_call_operand.vmem [shape: f32[10,1], index: 4, kind: input, shape index: {}]
  %s5 = inlined_call_operand.vmem [shape: f32[15,10], index: 5, kind: input, shape index: {}]
  %s6 = inlined_call_operand.vmem [shape: f32[15,1], index: 6, kind: input, shape index: {}]
  %s7 = inlined_call_operand.vmem [shape: f32[10,15], index: 7, kind: input, shape index: {}]
  %s8 = inlined_call_operand.vmem [shape: f32[10,1], index: 8, kind: input, shape index: {}]
  %s9 = inlined_call_operand.hbm [shape: f32[10,128], index: 9, kind: output, shape index: {}]
  %s10 = sld [smem:[#allocation0]]
  $region46: #{tpu_custom_call.1} parent=0
    _
  %s12 = ssub.s32 1, %s10
  %s13 = scalar_select 0, %s12, %s10
  $region1: #{tpu_custom_call.1} parent=0
    #allocation2 [shape = 'u8[8192]{0}', space=vmem, size = 0x2000, scoped, tag = 'output window, operand 0, single buffered']
    #allocation3 [shape = 's32[1]{0}', space=sflag, size = 0x4, scoped, tag = 'scoped memory for tpu_custom_call.1']
    %14 = vsyncpa [#allocation3], 0
    // Predicated region
    $region2: #{tpu_custom_call.1} parent=1 // pred_check
      _
    $region3: #{tpu_custom_call.1} parent=1 // pred_check_branch
      %16 = sbr.rel (0) target = $region5
    $region4: #{tpu_custom_call.1} parent=1 // pred_region
      _
    $region5: #{tpu_custom_call.1} parent=1 // pred_fallthru
      _
    // Predicated region
    $region6: #{tpu_custom_call.1} parent=1 // pred_check
      _
    $region7: #{tpu_custom_call.1} parent=1 // pred_check_branch
      %18 = sbr.rel (0) target = $region9
    $region8: #{tpu_custom_call.1} parent=1 // pred_region
      _
    $region9: #{tpu_custom_call.1} parent=1 // pred_fallthru
      _
    // Predicated region
    $region10: #{tpu_custom_call.1} parent=1 // pred_check
      _
    $region11: #{tpu_custom_call.1} parent=1 // pred_check_branch
      %20 = sbr.rel (0) target = $region13
    $region12: #{tpu_custom_call.1} parent=1 // pred_region
      _
    $region13: #{tpu_custom_call.1} parent=1 // pred_fallthru
      _
    // Predicated region
    $region14: #{tpu_custom_call.1} parent=1 // pred_check
      _
    $region15: #{tpu_custom_call.1} parent=1 // pred_check_branch
      %22 = sbr.rel (0) target = $region17
    $region16: #{tpu_custom_call.1} parent=1 // pred_region
      _
    $region17: #{tpu_custom_call.1} parent=1 // pred_fallthru
      _
    // Predicated region
    $region18: #{tpu_custom_call.1} parent=1 // pred_check
      _
    $region19: #{tpu_custom_call.1} parent=1 // pred_check_branch
      %24 = sbr.rel (0) target = $region21
    $region20: #{tpu_custom_call.1} parent=1 // pred_region
      _
    $region21: #{tpu_custom_call.1} parent=1 // pred_fallthru
      _
    // Predicated region
    $region22: #{tpu_custom_call.1} parent=1 // pred_check
      _
    $region23: #{tpu_custom_call.1} parent=1 // pred_check_branch
      %26 = sbr.rel (0) target = $region25
    $region24: #{tpu_custom_call.1} parent=1 // pred_region
      _
    $region25: #{tpu_custom_call.1} parent=1 // pred_fallthru
      _
    // Predicated region
    $region26: #{tpu_custom_call.1} parent=1 // pred_check
      _
    $region27: #{tpu_custom_call.1} parent=1 // pred_check_branch
      %28 = sbr.rel (0) target = $region29
    $region28: #{tpu_custom_call.1} parent=1 // pred_region
      _
    $region29: #{tpu_custom_call.1} parent=1 // pred_fallthru
      _
    // Predicated region
    $region30: #{tpu_custom_call.1} parent=1 // pred_check
      _
    $region31: #{tpu_custom_call.1} parent=1 // pred_check_branch
      %30 = sbr.rel (0) target = $region33
    $region32: #{tpu_custom_call.1} parent=1 // pred_region
      _
    $region33: #{tpu_custom_call.1} parent=1 // pred_fallthru
      _
    // Predicated region
    $region34: #{tpu_custom_call.1} parent=1 // pred_check
      _
    $region35: #{tpu_custom_call.1} parent=1 // pred_check_branch
      %32 = sbr.rel (0) target = $region37
    $region36: #{tpu_custom_call.1} parent=1 // pred_region
      _
    $region37: #{tpu_custom_call.1} parent=1 // pred_fallthru
      _
    %v33 = vld [vmem:[%s0] sm:$0xff]
    %v34 = vld [vmem:[%s0 + $0x8] sm:$0x3]
    %v35 = vld [vmem:[%s1] sm:$0xff]
    %v36 = vld [vmem:[%s1 + $0x8] sm:$0x7f]
    %v37 = vld [vmem:[%s2] sm:$0xff]
    %v38 = vld [vmem:[%s2 + $0x8] sm:$0x7f]
    %40 = vset.pattern.permute.xlu0 0
    %41 = vperm.xlu0 %40, %v37
    %v42 = vpop.permute.xlu0 %41
    %45 = vset.pattern.permute.xlu0 0
    %46 = vperm.xlu0 %45, %v38
    %v47 = vpop.permute.xlu0 %46
    %vm49 = vcmask 80896
    %v51 = vsel %vm49, %v35, 0
    %v54 = vsel %vm49, %v36, 0
    %vm56 = vcmask 1041408
    %v58 = vsel %vm56, %v34, 0
    %60 = vmatprep.subr.mxu0 0.0
    %61 = vmatpush1.msra.mxu0 %v33
    %62 = vmatprep.subr.mxu0 0.0
    %63 = vmatpush1.msra.mxu0 %v58
    %64 = vmatprep.subr.mxu0 0.0
    %65 = vmatpush1.msra.mxu0 0.0
    %66 = vmatprep.subr.mxu0 0.0
    %67 = vmatpush1.msra.mxu0 0.0
    %68 = vmatprep.subr.mxu0 0.0
    %69 = vmatpush1.msra.mxu0 0.0
    %70 = vmatprep.subr.mxu0 0.0
    %71 = vmatpush1.msra.mxu0 0.0
    %72 = vmatprep.subr.mxu0 0.0
    %73 = vmatpush1.msra.mxu0 0.0
    %74 = vmatprep.subr.mxu0 0.0
    %75 = vmatpush1.msra.mxu0 0.0
    %76 = vmatprep.subr.mxu0 0.0
    %77 = vmatpush1.msra.mxu0 0.0
    %78 = vmatprep.subr.mxu0 0.0
    %79 = vmatpush1.msra.mxu0 0.0
    %80 = vmatprep.subr.mxu0 0.0
    %81 = vmatpush1.msra.mxu0 0.0
    %82 = vmatprep.subr.mxu0 0.0
    %83 = vmatpush1.msra.mxu0 0.0
    %84 = vmatprep.subr.mxu0 0.0
    %85 = vmatpush1.msra.mxu0 0.0
    %86 = vmatprep.subr.mxu0 0.0
    %87 = vmatpush1.msra.mxu0 0.0
    %88 = vmatprep.subr.mxu0 0.0
    %89 = vmatpush1.msra.mxu0 0.0
    %90 = vmatprep.subr.mxu0 0.0
    %91 = vmatpush1.msra.mxu0 0.0
    %92 = vmatprep.subr.mxu0 0.0
    %93 = vmatpush1.msra.mxu0 0.0
    %94 = vmatprep.subr.mxu0 0.0
    %95 = vmatpush1.msra.mxu0 0.0
    %96 = vmatprep.subr.mxu0 0.0
    %97 = vmatpush1.msra.mxu0 0.0
    %98 = vmatprep.subr.mxu0 0.0
    %99 = vmatpush1.msra.mxu0 0.0
    %100 = vmatprep.subr.mxu0 0.0
    %101 = vmatpush1.msra.mxu0 0.0
    %102 = vmatprep.subr.mxu0 0.0
    %103 = vmatpush1.msra.mxu0 0.0
    %104 = vmatprep.subr.mxu0 0.0
    %105 = vmatpush1.msra.mxu0 0.0
    %106 = vmatprep.subr.mxu0 0.0
    %107 = vmatpush1.msra.mxu0 0.0
    %108 = vmatprep.subr.mxu0 0.0
    %109 = vmatpush1.msra.mxu0 0.0
    %110 = vmatprep.subr.mxu0 0.0
    %111 = vmatpush1.msra.mxu0 0.0
    %112 = vmatprep.subr.mxu0 0.0
    %113 = vmatpush1.msra.mxu0 0.0
    %114 = vmatprep.subr.mxu0 0.0
    %115 = vmatpush1.msra.mxu0 0.0
    %116 = vmatprep.subr.mxu0 0.0
    %117 = vmatpush1.msra.mxu0 0.0
    %118 = vmatprep.subr.mxu0 0.0
    %119 = vmatpush1.msra.mxu0 0.0
    %120 = vmatprep.subr.mxu0 0.0
    %121 = vmatpush1.msra.mxu0 0.0
    %122 = vmatprep.subr.mxu0 0.0
    %123 = vmatpush1.msra.mxu0 0.0
    %124 = vmatprep.mubr.f32.mxu0 0.0
    %125 = vmatmul.mubr.f32.gmra.mrb[0].mxu0 %v51
    %v126 = vpop.f32.mrb[0].mxu0
    %v127 = vadd.f32 %v42, %v126
    %v128 = vpop.f32.mrb[0].mxu0
    %129 = vmatprep.mubr.f32.mxu0 0.0
    %130 = vmatmul.mubr.f32.gmra.mrb[0].mxu0 %v54
    %v131 = vpop.f32.mrb[0].mxu0
    %v132 = vadd.f32 %v47, %v131
    %v133 = vpop.f32.mrb[0].mxu0
    %134 = vdwg.mxu0
    %v135 = vmax.f32 %v127, 0.0
    %v136 = vmax.f32 %v132, 0.0
    %v137 = vld [vmem:[%s3] sm:$0xff]
    %v138 = vld [vmem:[%s3 + $0x8] sm:$0x3]
    %v139 = vld [vmem:[%s4] sm:$0xff]
    %v140 = vld [vmem:[%s4 + $0x8] sm:$0x3]
    %142 = vset.pattern.permute.xlu0 0
    %143 = vperm.xlu0 %142, %v139
    %v144 = vpop.permute.xlu0 %143
    %147 = vset.pattern.permute.xlu0 0
    %148 = vperm.xlu0 %147, %v140
    %v149 = vpop.permute.xlu0 %148
    %vm151 = vcmask 121856
    %v153 = vsel %vm151, %v137, 0
    %v156 = vsel %vm151, %v138, 0
    %vm158 = vcmask 1046528
    %v160 = vsel %vm158, %v136, 0
    %162 = vmatprep.subr.mxu0 0.0
    %163 = vmatpush1.msra.mxu0 %v135
    %164 = vmatprep.subr.mxu0 0.0
    %165 = vmatpush1.msra.mxu0 %v160
    %166 = vmatprep.subr.mxu0 0.0
    %167 = vmatpush1.msra.mxu0 0.0
    %168 = vmatprep.subr.mxu0 0.0
    %169 = vmatpush1.msra.mxu0 0.0
    %170 = vmatprep.subr.mxu0 0.0
    %171 = vmatpush1.msra.mxu0 0.0
    %172 = vmatprep.subr.mxu0 0.0
    %173 = vmatpush1.msra.mxu0 0.0
    %174 = vmatprep.subr.mxu0 0.0
    %175 = vmatpush1.msra.mxu0 0.0
    %176 = vmatprep.subr.mxu0 0.0
    %177 = vmatpush1.msra.mxu0 0.0
    %178 = vmatprep.subr.mxu0 0.0
    %179 = vmatpush1.msra.mxu0 0.0
    %180 = vmatprep.subr.mxu0 0.0
    %181 = vmatpush1.msra.mxu0 0.0
    %182 = vmatprep.subr.mxu0 0.0
    %183 = vmatpush1.msra.mxu0 0.0
    %184 = vmatprep.subr.mxu0 0.0
    %185 = vmatpush1.msra.mxu0 0.0
    %186 = vmatprep.subr.mxu0 0.0
    %187 = vmatpush1.msra.mxu0 0.0
    %188 = vmatprep.subr.mxu0 0.0
    %189 = vmatpush1.msra.mxu0 0.0
    %190 = vmatprep.subr.mxu0 0.0
    %191 = vmatpush1.msra.mxu0 0.0
    %192 = vmatprep.subr.mxu0 0.0
    %193 = vmatpush1.msra.mxu0 0.0
    %194 = vmatprep.subr.mxu0 0.0
    %195 = vmatpush1.msra.mxu0 0.0
    %196 = vmatprep.subr.mxu0 0.0
    %197 = vmatpush1.msra.mxu0 0.0
    %198 = vmatprep.subr.mxu0 0.0
    %199 = vmatpush1.msra.mxu0 0.0
    %200 = vmatprep.subr.mxu0 0.0
    %201 = vmatpush1.msra.mxu0 0.0
    %202 = vmatprep.subr.mxu0 0.0
    %203 = vmatpush1.msra.mxu0 0.0
    %204 = vmatprep.subr.mxu0 0.0
    %205 = vmatpush1.msra.mxu0 0.0
    %206 = vmatprep.subr.mxu0 0.0
    %207 = vmatpush1.msra.mxu0 0.0
    %208 = vmatprep.subr.mxu0 0.0
    %209 = vmatpush1.msra.mxu0 0.0
    %210 = vmatprep.subr.mxu0 0.0
    %211 = vmatpush1.msra.mxu0 0.0
    %212 = vmatprep.subr.mxu0 0.0
    %213 = vmatpush1.msra.mxu0 0.0
    %214 = vmatprep.subr.mxu0 0.0
    %215 = vmatpush1.msra.mxu0 0.0
    %216 = vmatprep.subr.mxu0 0.0
    %217 = vmatpush1.msra.mxu0 0.0
    %218 = vmatprep.subr.mxu0 0.0
    %219 = vmatpush1.msra.mxu0 0.0
    %220 = vmatprep.subr.mxu0 0.0
    %221 = vmatpush1.msra.mxu0 0.0
    %222 = vmatprep.subr.mxu0 0.0
    %223 = vmatpush1.msra.mxu0 0.0
    %224 = vmatprep.subr.mxu0 0.0
    %225 = vmatpush1.msra.mxu0 0.0
    %226 = vmatprep.mubr.f32.mxu0 0.0
    %227 = vmatmul.mubr.f32.gmra.mrb[0].mxu0 %v153
    %v228 = vpop.f32.mrb[0].mxu0
    %v229 = vadd.f32 %v144, %v228
    %v230 = vpop.f32.mrb[0].mxu0
    %231 = vmatprep.mubr.f32.mxu0 0.0
    %232 = vmatmul.mubr.f32.gmra.mrb[0].mxu0 %v156
    %v233 = vpop.f32.mrb[0].mxu0
    %v234 = vadd.f32 %v149, %v233
    %v235 = vpop.f32.mrb[0].mxu0
    %236 = vdwg.mxu0
    %v237 = vmax.f32 %v229, 0.0
    %v238 = vmax.f32 %v234, 0.0
    %v239 = vld [vmem:[%s5] sm:$0xff]
    %v240 = vld [vmem:[%s5 + $0x8] sm:$0x7f]
    %v241 = vld [vmem:[%s6] sm:$0xff]
    %v242 = vld [vmem:[%s6 + $0x8] sm:$0x7f]
    %244 = vset.pattern.permute.xlu0 0
    %245 = vperm.xlu0 %244, %v241
    %v246 = vpop.permute.xlu0 %245
    %249 = vset.pattern.permute.xlu0 0
    %250 = vperm.xlu0 %249, %v242
    %v251 = vpop.permute.xlu0 %250
    %v254 = vsel %vm49, %v239, 0
    %v257 = vsel %vm49, %v240, 0
    %v260 = vsel %vm56, %v238, 0
    %262 = vmatprep.subr.mxu0 0.0
    %263 = vmatpush1.msra.mxu0 %v237
    %264 = vmatprep.subr.mxu0 0.0
    %265 = vmatpush1.msra.mxu0 %v260
    %266 = vmatprep.subr.mxu0 0.0
    %267 = vmatpush1.msra.mxu0 0.0
    %268 = vmatprep.subr.mxu0 0.0
    %269 = vmatpush1.msra.mxu0 0.0
    %270 = vmatprep.subr.mxu0 0.0
    %271 = vmatpush1.msra.mxu0 0.0
    %272 = vmatprep.subr.mxu0 0.0
    %273 = vmatpush1.msra.mxu0 0.0
    %274 = vmatprep.subr.mxu0 0.0
    %275 = vmatpush1.msra.mxu0 0.0
    %276 = vmatprep.subr.mxu0 0.0
    %277 = vmatpush1.msra.mxu0 0.0
    %278 = vmatprep.subr.mxu0 0.0
    %279 = vmatpush1.msra.mxu0 0.0
    %280 = vmatprep.subr.mxu0 0.0
    %281 = vmatpush1.msra.mxu0 0.0
    %282 = vmatprep.subr.mxu0 0.0
    %283 = vmatpush1.msra.mxu0 0.0
    %284 = vmatprep.subr.mxu0 0.0
    %285 = vmatpush1.msra.mxu0 0.0
    %286 = vmatprep.subr.mxu0 0.0
    %287 = vmatpush1.msra.mxu0 0.0
    %288 = vmatprep.subr.mxu0 0.0
    %289 = vmatpush1.msra.mxu0 0.0
    %290 = vmatprep.subr.mxu0 0.0
    %291 = vmatpush1.msra.mxu0 0.0
    %292 = vmatprep.subr.mxu0 0.0
    %293 = vmatpush1.msra.mxu0 0.0
    %294 = vmatprep.subr.mxu0 0.0
    %295 = vmatpush1.msra.mxu0 0.0
    %296 = vmatprep.subr.mxu0 0.0
    %297 = vmatpush1.msra.mxu0 0.0
    %298 = vmatprep.subr.mxu0 0.0
    %299 = vmatpush1.msra.mxu0 0.0
    %300 = vmatprep.subr.mxu0 0.0
    %301 = vmatpush1.msra.mxu0 0.0
    %302 = vmatprep.subr.mxu0 0.0
    %303 = vmatpush1.msra.mxu0 0.0
    %304 = vmatprep.subr.mxu0 0.0
    %305 = vmatpush1.msra.mxu0 0.0
    %306 = vmatprep.subr.mxu0 0.0
    %307 = vmatpush1.msra.mxu0 0.0
    %308 = vmatprep.subr.mxu0 0.0
    %309 = vmatpush1.msra.mxu0 0.0
    %310 = vmatprep.subr.mxu0 0.0
    %311 = vmatpush1.msra.mxu0 0.0
    %312 = vmatprep.subr.mxu0 0.0
    %313 = vmatpush1.msra.mxu0 0.0
    %314 = vmatprep.subr.mxu0 0.0
    %315 = vmatpush1.msra.mxu0 0.0
    %316 = vmatprep.subr.mxu0 0.0
    %317 = vmatpush1.msra.mxu0 0.0
    %318 = vmatprep.subr.mxu0 0.0
    %319 = vmatpush1.msra.mxu0 0.0
    %320 = vmatprep.subr.mxu0 0.0
    %321 = vmatpush1.msra.mxu0 0.0
    %322 = vmatprep.subr.mxu0 0.0
    %323 = vmatpush1.msra.mxu0 0.0
    %324 = vmatprep.subr.mxu0 0.0
    %325 = vmatpush1.msra.mxu0 0.0
    %326 = vmatprep.mubr.f32.mxu0 0.0
    %327 = vmatmul.mubr.f32.gmra.mrb[0].mxu0 %v254
    %v328 = vpop.f32.mrb[0].mxu0
    %v329 = vadd.f32 %v246, %v328
    %v330 = vpop.f32.mrb[0].mxu0
    %331 = vmatprep.mubr.f32.mxu0 0.0
    %332 = vmatmul.mubr.f32.gmra.mrb[0].mxu0 %v257
    %v333 = vpop.f32.mrb[0].mxu0
    %v334 = vadd.f32 %v251, %v333
    %v335 = vpop.f32.mrb[0].mxu0
    %336 = vdwg.mxu0
    %v337 = vmax.f32 %v329, 0.0
    %v338 = vmax.f32 %v334, 0.0
    %v339 = vld [vmem:[%s7] sm:$0xff]
    %v340 = vld [vmem:[%s7 + $0x8] sm:$0x3]
    %v341 = vld [vmem:[%s8] sm:$0xff]
    %v342 = vld [vmem:[%s8 + $0x8] sm:$0x3]
    %344 = vset.pattern.permute.xlu0 0
    %345 = vperm.xlu0 %344, %v341
    %v346 = vpop.permute.xlu0 %345
    %349 = vset.pattern.permute.xlu0 0
    %350 = vperm.xlu0 %349, %v342
    %v351 = vpop.permute.xlu0 %350
    %v354 = vsel %vm151, %v339, 0
    %v357 = vsel %vm151, %v340, 0
    %v360 = vsel %vm158, %v338, 0
    %362 = vmatprep.subr.mxu0 0.0
    %363 = vmatpush1.msra.mxu0 %v337
    %364 = vmatprep.subr.mxu0 0.0
    %365 = vmatpush1.msra.mxu0 %v360
    %366 = vmatprep.subr.mxu0 0.0
    %367 = vmatpush1.msra.mxu0 0.0
    %368 = vmatprep.subr.mxu0 0.0
    %369 = vmatpush1.msra.mxu0 0.0
    %370 = vmatprep.subr.mxu0 0.0
    %371 = vmatpush1.msra.mxu0 0.0
    %372 = vmatprep.subr.mxu0 0.0
    %373 = vmatpush1.msra.mxu0 0.0
    %374 = vmatprep.subr.mxu0 0.0
    %375 = vmatpush1.msra.mxu0 0.0
    %376 = vmatprep.subr.mxu0 0.0
    %377 = vmatpush1.msra.mxu0 0.0
    %378 = vmatprep.subr.mxu0 0.0
    %379 = vmatpush1.msra.mxu0 0.0
    %380 = vmatprep.subr.mxu0 0.0
    %381 = vmatpush1.msra.mxu0 0.0
    %382 = vmatprep.subr.mxu0 0.0
    %383 = vmatpush1.msra.mxu0 0.0
    %384 = vmatprep.subr.mxu0 0.0
    %385 = vmatpush1.msra.mxu0 0.0
    %386 = vmatprep.subr.mxu0 0.0
    %387 = vmatpush1.msra.mxu0 0.0
    %388 = vmatprep.subr.mxu0 0.0
    %389 = vmatpush1.msra.mxu0 0.0
    %390 = vmatprep.subr.mxu0 0.0
    %391 = vmatpush1.msra.mxu0 0.0
    %392 = vmatprep.subr.mxu0 0.0
    %393 = vmatpush1.msra.mxu0 0.0
    %394 = vmatprep.subr.mxu0 0.0
    %395 = vmatpush1.msra.mxu0 0.0
    %396 = vmatprep.subr.mxu0 0.0
    %397 = vmatpush1.msra.mxu0 0.0
    %398 = vmatprep.subr.mxu0 0.0
    %399 = vmatpush1.msra.mxu0 0.0
    %400 = vmatprep.subr.mxu0 0.0
    %401 = vmatpush1.msra.mxu0 0.0
    %402 = vmatprep.subr.mxu0 0.0
    %403 = vmatpush1.msra.mxu0 0.0
    %404 = vmatprep.subr.mxu0 0.0
    %405 = vmatpush1.msra.mxu0 0.0
    %406 = vmatprep.subr.mxu0 0.0
    %407 = vmatpush1.msra.mxu0 0.0
    %408 = vmatprep.subr.mxu0 0.0
    %409 = vmatpush1.msra.mxu0 0.0
    %410 = vmatprep.subr.mxu0 0.0
    %411 = vmatpush1.msra.mxu0 0.0
    %412 = vmatprep.subr.mxu0 0.0
    %413 = vmatpush1.msra.mxu0 0.0
    %414 = vmatprep.subr.mxu0 0.0
    %415 = vmatpush1.msra.mxu0 0.0
    %416 = vmatprep.subr.mxu0 0.0
    %417 = vmatpush1.msra.mxu0 0.0
    %418 = vmatprep.subr.mxu0 0.0
    %419 = vmatpush1.msra.mxu0 0.0
    %420 = vmatprep.subr.mxu0 0.0
    %421 = vmatpush1.msra.mxu0 0.0
    %422 = vmatprep.subr.mxu0 0.0
    %423 = vmatpush1.msra.mxu0 0.0
    %424 = vmatprep.subr.mxu0 0.0
    %425 = vmatpush1.msra.mxu0 0.0
    %426 = vmatprep.mubr.f32.mxu0 0.0
    %427 = vmatmul.mubr.f32.gmra.mrb[0].mxu0 %v354
    %v428 = vpop.f32.mrb[0].mxu0
    %v429 = vadd.f32 %v346, %v428
    %v430 = vpop.f32.mrb[0].mxu0
    %431 = vmatprep.mubr.f32.mxu0 0.0
    %432 = vmatmul.mubr.f32.gmra.mrb[0].mxu0 %v357
    %v433 = vpop.f32.mrb[0].mxu0
    %v434 = vadd.f32 %v351, %v433
    %v435 = vpop.f32.mrb[0].mxu0
    %436 = vdwg.mxu0
    %437 = vst [vmem:[#allocation2] sm:$0xff] %v429
    %438 = vst [vmem:[#allocation2 + $0x8] sm:$0x3] %v434
    // Predicated region
    $region38: #{tpu_custom_call.1} parent=1 // pred_check
      _
    $region39: #{tpu_custom_call.1} parent=1 // pred_check_branch
      %440 = sbr.rel (0) target = $region41
    $region40: #{tpu_custom_call.1} parent=1 // pred_region
      %s442 = ssub.s32 256, 256
      %443 = vsyncadd [#allocation3], %s442
      %s444 = sshll.u32 [#allocation2], 4
      %s445 = int_to_ptr.vmem [resolvable:$true] %s444
      %450 = dma.vmem_to_hbm [thread:$0]  %s445, 256, %s9, [#allocation3], 128, 128, 8
    $region41: #{tpu_custom_call.1} parent=1 // pred_fallthru
      _
    // Predicated region
    $region42: #{tpu_custom_call.1} parent=1 // pred_check
      _
    $region43: #{tpu_custom_call.1} parent=1 // pred_check_branch
      %452 = sbr.rel (0) target = $region45
    $region44: #{tpu_custom_call.1} parent=1 // pred_region
      %453 = dma.done [#allocation3], 256
    $region45: #{tpu_custom_call.1} parent=1 // pred_fallthru
      _
    %454 = vsyncpa [#allocation3], 1

</llo_original>
